<compile_context>
chip_gen: v5e
topology: v5e:2x2
jax: 0.10.0
libtpu: 0.0.40
codegen_flags: <defaults>
</compile_context>

<pallas_src>
import functools
import math

import jax
import jax.numpy as jnp
from jax.experimental import pallas as pl
from jax.experimental.pallas import tpu as pltpu


def _partial_sums_kernel(p_ref, t_ref, out_ref, *, H, W, L):
    """Partial sums over one (bc_tile, H, L) block; L = k*W packed lanes.

    Output block (1, 8, 128): row 0, lanes 0..6 hold
      [sum(p*t), sum(p), sum(t), sum(ps*ts), sum(ps), sum(ts), bce_sum]
    """
    p = p_ref[...].astype(jnp.float32)
    t = t_ref[...].astype(jnp.float32)
    shape = p.shape

    lane = jax.lax.broadcasted_iota(jnp.int32, shape, 2)
    col = lane % W                      # per-plane column index
    first_col = col == 0                # plane-seam / edge columns
    last_col = col == (W - 1)

    def pools(x):
        # 3x3 max & min pool, stride 1, "same" output.  Edge replication is
        # equivalent to F.max_pool2d's implicit -inf (+inf for min) padding
        # because the centre element is always part of the window.
        # --- rows (sublane axis): shifted slices ---
        up = jnp.concatenate([x[:, :1, :], x[:, : H - 1, :]], axis=1)
        dn = jnp.concatenate([x[:, 1:, :], x[:, H - 1 :, :]], axis=1)
        rmax = jnp.maximum(x, jnp.maximum(up, dn))
        rmin = jnp.minimum(x, jnp.minimum(up, dn))

        # --- cols (lane axis): XLU roll + per-plane edge fix-up ---
        def colpool(r, op):
            lft = pltpu.roll(r, 1, axis=2)      # [..., j] = r[..., j-1] (wraps)
            rgt = pltpu.roll(r, L - 1, axis=2)  # [..., j] = r[..., j+1] (wraps)
            lft = jnp.where(first_col, r, lft)  # replicate at plane edges
            rgt = jnp.where(last_col, r, rgt)
            return op(r, op(lft, rgt))

        return colpool(rmax, jnp.maximum), colpool(rmin, jnp.minimum)

    pmax_p, pmin_p = pools(p)
    pmax_t, pmin_t = pools(t)
    # pred_s = max_pool(x) - max_pool(-x) == max_pool(x) + min_pool(x)
    p_s = pmax_p + pmin_p
    t_s = pmax_t + pmin_t

    sum_pt = jnp.sum(p * t)
    sum_p = jnp.sum(p)
    sum_t = jnp.sum(t)
    sum_pst = jnp.sum(p_s * t_s)
    sum_ps = jnp.sum(p_s)
    sum_ts = jnp.sum(t_s)

    # BCE partial sum (nn.BCELoss semantics: logs clamped at -100).
    logp = jnp.maximum(jnp.log(p), -100.0)
    log1mp = jnp.maximum(jnp.log(1.0 - p), -100.0)
    bce_sum = -jnp.sum(t * logp + (1.0 - t) * log1mp)

    # Lane-dense partial-sum block (single unmasked vector store).
    lane_o = jax.lax.broadcasted_iota(jnp.int32, (1, 8, 128), 2)
    row_o = jax.lax.broadcasted_iota(jnp.int32, (1, 8, 128), 1)
    vals = jnp.where(lane_o == 0, sum_pt,
           jnp.where(lane_o == 1, sum_p,
           jnp.where(lane_o == 2, sum_t,
           jnp.where(lane_o == 3, sum_pst,
           jnp.where(lane_o == 4, sum_ps,
           jnp.where(lane_o == 5, sum_ts,
           jnp.where(lane_o == 6, bce_sum, 0.0)))))))
    out_ref[...] = jnp.where(row_o == 0, vals, 0.0)


def _largest_divisor_leq(n, cap):
    cap = max(1, min(n, cap))
    for d in range(cap, 0, -1):
        if n % d == 0:
            return d
    return 1


def combined_loss(pred, target, beta=1.0, use_cl=True, use_cb=True):
    """pred, target: (N, C, H, W); pred in (0,1), target in [0,1]."""
    N, C, H, W = pred.shape
    BC = N * C
    p = pred.reshape(BC, H, W).astype(jnp.float32)
    t = target.reshape(BC, H, W).astype(jnp.float32)

    # --- lane packing: pack k planes side-by-side so the last dim is >= 128 ---
    if W < 128 and 128 % W == 0:
        k = math.gcd(BC, 128 // W)
    else:
        k = 1
    BCp = BC // k
    L = k * W
    if k > 1:
        # (BC,H,W) -> (BCp,k,H,W) -> (BCp,H,k,W) -> (BCp,H,k*W).  One XLA
        # transpose pass over HBM, repaid by (128/W)x denser vregs in the
        # VALU-bound kernel.
        p = p.reshape(BCp, k, H, W).transpose(0, 2, 1, 3).reshape(BCp, H, L)
        t = t.reshape(BCp, k, H, W).transpose(0, 2, 1, 3).reshape(BCp, H, L)

    # --- tiling over the packed plane axis ---
    # bc_tile divides BCp exactly (no HBM zero-pad copy).  Cap each input block
    # at ~2 MiB and, when possible, keep >= 2 grid steps so the "parallel" axis
    # can shard across the two TensorCores on v7x.
    plane_bytes = H * L * 4
    byte_cap = max(1, (2 << 20) // plane_bytes)
    cap = byte_cap if BCp < 2 else min(byte_cap, max(1, BCp // 2))
    bc_tile = _largest_divisor_leq(BCp, cap)
    num_tiles = BCp // bc_tile

    kernel = functools.partial(_partial_sums_kernel, H=H, W=W, L=L)
    partials = pl.pallas_call(
        kernel,
        grid=(num_tiles,),
        in_specs=[pl.BlockSpec((bc_tile, H, L), lambda i: (i, 0, 0))] * 2,
        out_specs=pl.BlockSpec((1, 8, 128), lambda i: (i, 0, 0)),
        out_shape=jax.ShapeDtypeStruct((num_tiles, 8, 128), jnp.float32),
        compiler_params=pltpu.CompilerParams(
            dimension_semantics=("parallel",),
            vmem_limit_bytes=48 * 1024 * 1024,   # safe within v7x 64 MiB/TC
        ),
    )(p, t)

    s = jnp.sum(partials[:, 0, :7], axis=0)
    sum_pt, sum_p, sum_t = s[0], s[1], s[2]
    sum_pst, sum_ps, sum_ts = s[3], s[4], s[5]
    bce_sum = s[6]

    smooth = 1.0
    n_elem = float(N * C * H * W)
    # TODO(synk): bce_dice is an injected module in the PyTorch code; assumed
    #             BCELoss(mean) + SoftDiceLoss(smooth=1), i.e. BceDiceLoss.
    bce = bce_sum / n_elem
    dice_pt = 1.0 - (2.0 * sum_pt + smooth) / (sum_p + sum_t + smooth)
    loss = bce + dice_pt                       # bce_dice(pred, target)
    if use_cl:
        # clDiceLoss = dice(pred, target) + dice(pred_s, target_s)
        dice_s = 1.0 - (2.0 * sum_pst + smooth) / (sum_ps + sum_ts + smooth)
        loss = loss + dice_pt + dice_s
    if use_cb:
        fp = sum_p - sum_pt                    # sum(pred * (1 - target))
        fn = sum_t - sum_pt                    # sum((1 - pred) * target)
        denom = sum_pt + beta * fp + (1.0 - beta) * fn + 1e-6
        loss = loss + 1.0 - sum_pt / denom
    return loss


def _reference_combined_loss(pred, target, beta=1.0, use_cl=True, use_cb=True):
    """Pure-JAX reference mirroring the PyTorch module (for self-check)."""
    p = pred.astype(jnp.float32)
    t = target.astype(jnp.float32)

    def mp(x):  # F.max_pool2d(x, 3, 1, 1): 3x3, stride 1, implicit -inf pad
        return jax.lax.reduce_window(
            x, -jnp.inf, jax.lax.max, (1, 1, 3, 3), (1, 1, 1, 1),
            [(0, 0), (0, 0), (1, 1), (1, 1)])

    def dice(a, b):
        smooth = 1.0
        inter = jnp.sum(a * b)
        return 1.0 - (2.0 * inter + smooth) / (jnp.sum(a) + jnp.sum(b) + smooth)

    logp = jnp.maximum(jnp.log(p), -100.0)
    log1mp = jnp.maximum(jnp.log(1.0 - p), -100.0)
    bce = -jnp.mean(t * logp + (1.0 - t) * log1mp)
    loss = bce + dice(p, t)
    if use_cl:
        p_s = mp(p) - mp(-p)
        t_s = mp(t) - mp(-t)
        loss = loss + dice(p, t) + dice(p_s, t_s)
    if use_cb:
        tp = jnp.sum(p * t)
        fp = jnp.sum(p * (1.0 - t))
        fn = jnp.sum((1.0 - p) * t)
        loss = loss + 1.0 - tp / (tp + beta * fp + (1.0 - beta) * fn + 1e-6)
    return loss


if __name__ == "__main__":
    key = jax.random.PRNGKey(0)
    k1, k2 = jax.random.split(key)
    shape = (2, 4, 16, 16)
    # pred: probabilities in (0,1); target: binary mask.
    pred = jax.nn.sigmoid(jax.random.normal(k1, shape, dtype=jnp.float32))
    target = (jax.random.uniform(k2, shape) > 0.5).astype(jnp.float32)

    loss = combined_loss(pred, target, beta=1.0)
    loss = jax.block_until_ready(loss)
    assert loss.shape == () and bool(jnp.isfinite(loss))

    ref = jax.block_until_ready(_reference_combined_loss(pred, target, beta=1.0))
    assert bool(jnp.allclose(loss, ref, rtol=1e-4, atol=1e-4)), (loss, ref)

    print("KERNEL_OK")
</pallas_src>

<mosaic_0001>
module attributes {stable_mosaic.version = 11 : i64} {
  func.func @_partial_sums_kernel(%arg0: i32, %arg1: memref<1x16x128xf32, #tpu.memory_space<vmem>>, %arg2: memref<1x16x128xf32, #tpu.memory_space<vmem>>, %arg3: memref<1x8x128xf32, #tpu.memory_space<vmem>>) attributes {dimension_semantics = [#tpu.dimension_semantics<parallel>], iteration_bounds = array<i64: 1>, scalar_prefetch = 0 : i64, scratch_operands = 0 : i64, tpu.core_type = #tpu.core_type<tc>, window_params = [{transform_indices = @transform_0, window_bounds = array<i64: 1, 16, 128>}, {transform_indices = @transform_1, window_bounds = array<i64: 1, 16, 128>}, {transform_indices = @transform_2, window_bounds = array<i64: 1, 8, 128>}]} {
    %c0 = arith.constant 0 : index
    %c0_0 = arith.constant 0 : index
    %c0_1 = arith.constant 0 : index
    %0 = vector.load %arg1[%c0, %c0_0, %c0_1] : memref<1x16x128xf32, #tpu.memory_space<vmem>>, vector<1x16x128xf32>
    %c0_2 = arith.constant 0 : index
    %c0_3 = arith.constant 0 : index
    %c0_4 = arith.constant 0 : index
    %1 = vector.load %arg2[%c0_2, %c0_3, %c0_4] : memref<1x16x128xf32, #tpu.memory_space<vmem>>, vector<1x16x128xf32>
    %2 = tpu.iota {dimensions = array<i32: 2>} : vector<1x16x128xi32>
    %c16_i32 = arith.constant 16 : i32
    %c0_i32 = arith.constant 0 : i32
    %3 = arith.cmpi eq, %c16_i32, %c0_i32 : i32
    %c1_i32 = arith.constant 1 : i32
    %4 = arith.select %3, %c1_i32, %c16_i32 : i32
    %5 = vector.broadcast %4 : i32 to vector<1x16x128xi32>
    %6 = arith.remsi %2, %5 : vector<1x16x128xi32>
    %c0_i32_5 = arith.constant 0 : i32
    %7 = vector.broadcast %c0_i32_5 : i32 to vector<1x16x128xi32>
    %8 = arith.cmpi ne, %6, %7 : vector<1x16x128xi32>
    %c0_i32_6 = arith.constant 0 : i32
    %9 = vector.broadcast %c0_i32_6 : i32 to vector<1x16x128xi32>
    %10 = arith.cmpi slt, %6, %9 : vector<1x16x128xi32>
    %c0_i32_7 = arith.constant 0 : i32
    %11 = arith.cmpi slt, %4, %c0_i32_7 : i32
    %12 = vector.broadcast %11 : i1 to vector<1x16x128xi1>
    %13 = vector.broadcast %12 : vector<1x16x128xi1> to vector<1x16x128xi1>
    %14 = arith.xori %10, %13 : vector<1x16x128xi1>
    %15 = arith.andi %14, %8 : vector<1x16x128xi1>
    %16 = vector.broadcast %4 : i32 to vector<1x16x128xi32>
    %17 = arith.addi %6, %16 : vector<1x16x128xi32>
    %18 = arith.select %15, %17, %6 : vector<1x16x128xi1>, vector<1x16x128xi32>
    %c0_i32_8 = arith.constant 0 : i32
    %19 = vector.broadcast %c0_i32_8 : i32 to vector<1x16x128xi32>
    %20 = arith.cmpi eq, %18, %19 : vector<1x16x128xi32>
    %c15_i32 = arith.constant 15 : i32
    %21 = vector.broadcast %c15_i32 : i32 to vector<1x16x128xi32>
    %22 = arith.cmpi eq, %18, %21 : vector<1x16x128xi32>
    %23 = vector.extract_strided_slice %0 {offsets = [0, 0, 0], sizes = [1, 1, 128], strides = [1, 1, 1]} : vector<1x16x128xf32> to vector<1x1x128xf32>
    %24 = vector.extract_strided_slice %0 {offsets = [0, 0, 0], sizes = [1, 15, 128], strides = [1, 1, 1]} : vector<1x16x128xf32> to vector<1x15x128xf32>
    %25 = tpu.concatenate %23, %24 in 1 : vector<1x1x128xf32>, vector<1x15x128xf32> -> vector<1x16x128xf32>
    %26 = vector.extract_strided_slice %0 {offsets = [0, 1, 0], sizes = [1, 15, 128], strides = [1, 1, 1]} : vector<1x16x128xf32> to vector<1x15x128xf32>
    %27 = vector.extract_strided_slice %0 {offsets = [0, 15, 0], sizes = [1, 1, 128], strides = [1, 1, 1]} : vector<1x16x128xf32> to vector<1x1x128xf32>
    %28 = tpu.concatenate %26, %27 in 1 : vector<1x15x128xf32>, vector<1x1x128xf32> -> vector<1x16x128xf32>
    %29 = arith.maximumf %25, %28 : vector<1x16x128xf32>
    %30 = arith.maximumf %0, %29 : vector<1x16x128xf32>
    %31 = arith.minimumf %25, %28 : vector<1x16x128xf32>
    %32 = arith.minimumf %0, %31 : vector<1x16x128xf32>
    %c1_i32_9 = arith.constant 1 : i32
    %33 = tpu.dynamic_rotate %30 by %c1_i32_9 dim 2 : vector<1x16x128xf32>, i32 -> vector<1x16x128xf32>
    %c127_i32 = arith.constant 127 : i32
    %34 = tpu.dynamic_rotate %30 by %c127_i32 dim 2 : vector<1x16x128xf32>, i32 -> vector<1x16x128xf32>
    %35 = arith.select %20, %30, %33 : vector<1x16x128xi1>, vector<1x16x128xf32>
    %36 = arith.select %22, %30, %34 : vector<1x16x128xi1>, vector<1x16x128xf32>
    %37 = arith.maximumf %35, %36 : vector<1x16x128xf32>
    %38 = arith.maximumf %30, %37 : vector<1x16x128xf32>
    %c1_i32_10 = arith.constant 1 : i32
    %39 = tpu.dynamic_rotate %32 by %c1_i32_10 dim 2 : vector<1x16x128xf32>, i32 -> vector<1x16x128xf32>
    %c127_i32_11 = arith.constant 127 : i32
    %40 = tpu.dynamic_rotate %32 by %c127_i32_11 dim 2 : vector<1x16x128xf32>, i32 -> vector<1x16x128xf32>
    %41 = arith.select %20, %32, %39 : vector<1x16x128xi1>, vector<1x16x128xf32>
    %42 = arith.select %22, %32, %40 : vector<1x16x128xi1>, vector<1x16x128xf32>
    %43 = arith.minimumf %41, %42 : vector<1x16x128xf32>
    %44 = arith.minimumf %32, %43 : vector<1x16x128xf32>
    %45 = vector.extract_strided_slice %1 {offsets = [0, 0, 0], sizes = [1, 1, 128], strides = [1, 1, 1]} : vector<1x16x128xf32> to vector<1x1x128xf32>
    %46 = vector.extract_strided_slice %1 {offsets = [0, 0, 0], sizes = [1, 15, 128], strides = [1, 1, 1]} : vector<1x16x128xf32> to vector<1x15x128xf32>
    %47 = tpu.concatenate %45, %46 in 1 : vector<1x1x128xf32>, vector<1x15x128xf32> -> vector<1x16x128xf32>
    %48 = vector.extract_strided_slice %1 {offsets = [0, 1, 0], sizes = [1, 15, 128], strides = [1, 1, 1]} : vector<1x16x128xf32> to vector<1x15x128xf32>
    %49 = vector.extract_strided_slice %1 {offsets = [0, 15, 0], sizes = [1, 1, 128], strides = [1, 1, 1]} : vector<1x16x128xf32> to vector<1x1x128xf32>
    %50 = tpu.concatenate %48, %49 in 1 : vector<1x15x128xf32>, vector<1x1x128xf32> -> vector<1x16x128xf32>
    %51 = arith.maximumf %47, %50 : vector<1x16x128xf32>
    %52 = arith.maximumf %1, %51 : vector<1x16x128xf32>
    %53 = arith.minimumf %47, %50 : vector<1x16x128xf32>
    %54 = arith.minimumf %1, %53 : vector<1x16x128xf32>
    %c1_i32_12 = arith.constant 1 : i32
    %55 = tpu.dynamic_rotate %52 by %c1_i32_12 dim 2 : vector<1x16x128xf32>, i32 -> vector<1x16x128xf32>
    %c127_i32_13 = arith.constant 127 : i32
    %56 = tpu.dynamic_rotate %52 by %c127_i32_13 dim 2 : vector<1x16x128xf32>, i32 -> vector<1x16x128xf32>
    %57 = arith.select %20, %52, %55 : vector<1x16x128xi1>, vector<1x16x128xf32>
    %58 = arith.select %22, %52, %56 : vector<1x16x128xi1>, vector<1x16x128xf32>
    %59 = arith.maximumf %57, %58 : vector<1x16x128xf32>
    %60 = arith.maximumf %52, %59 : vector<1x16x128xf32>
    %c1_i32_14 = arith.constant 1 : i32
    %61 = tpu.dynamic_rotate %54 by %c1_i32_14 dim 2 : vector<1x16x128xf32>, i32 -> vector<1x16x128xf32>
    %c127_i32_15 = arith.constant 127 : i32
    %62 = tpu.dynamic_rotate %54 by %c127_i32_15 dim 2 : vector<1x16x128xf32>, i32 -> vector<1x16x128xf32>
    %63 = arith.select %20, %54, %61 : vector<1x16x128xi1>, vector<1x16x128xf32>
    %64 = arith.select %22, %54, %62 : vector<1x16x128xi1>, vector<1x16x128xf32>
    %65 = arith.minimumf %63, %64 : vector<1x16x128xf32>
    %66 = arith.minimumf %54, %65 : vector<1x16x128xf32>
    %67 = arith.addf %38, %44 : vector<1x16x128xf32>
    %68 = arith.addf %60, %66 : vector<1x16x128xf32>
    %69 = arith.mulf %0, %1 : vector<1x16x128xf32>
    %70 = vector.shape_cast %69 : vector<1x16x128xf32> to vector<1x1x16x128xf32>
    %cst = arith.constant dense<0.000000e+00> : vector<1xf32>
    %71 = vector.multi_reduction <add>, %70, %cst [1, 2, 3] : vector<1x1x16x128xf32> to vector<1xf32>
    %72 = vector.shape_cast %71 : vector<1xf32> to vector<1x1x1x1xf32>
    %73 = vector.extract %72[0, 0, 0, 0] : f32 from vector<1x1x1x1xf32>
    %74 = vector.shape_cast %0 : vector<1x16x128xf32> to vector<1x1x16x128xf32>
    %cst_16 = arith.constant dense<0.000000e+00> : vector<1xf32>
    %75 = vector.multi_reduction <add>, %74, %cst_16 [1, 2, 3] : vector<1x1x16x128xf32> to vector<1xf32>
    %76 = vector.shape_cast %75 : vector<1xf32> to vector<1x1x1x1xf32>
    %77 = vector.extract %76[0, 0, 0, 0] : f32 from vector<1x1x1x1xf32>
    %78 = vector.shape_cast %1 : vector<1x16x128xf32> to vector<1x1x16x128xf32>
    %cst_17 = arith.constant dense<0.000000e+00> : vector<1xf32>
    %79 = vector.multi_reduction <add>, %78, %cst_17 [1, 2, 3] : vector<1x1x16x128xf32> to vector<1xf32>
    %80 = vector.shape_cast %79 : vector<1xf32> to vector<1x1x1x1xf32>
    %81 = vector.extract %80[0, 0, 0, 0] : f32 from vector<1x1x1x1xf32>
    %82 = arith.mulf %67, %68 : vector<1x16x128xf32>
    %83 = vector.shape_cast %82 : vector<1x16x128xf32> to vector<1x1x16x128xf32>
    %cst_18 = arith.constant dense<0.000000e+00> : vector<1xf32>
    %84 = vector.multi_reduction <add>, %83, %cst_18 [1, 2, 3] : vector<1x1x16x128xf32> to vector<1xf32>
    %85 = vector.shape_cast %84 : vector<1xf32> to vector<1x1x1x1xf32>
    %86 = vector.extract %85[0, 0, 0, 0] : f32 from vector<1x1x1x1xf32>
    %87 = vector.shape_cast %67 : vector<1x16x128xf32> to vector<1x1x16x128xf32>
    %cst_19 = arith.constant dense<0.000000e+00> : vector<1xf32>
    %88 = vector.multi_reduction <add>, %87, %cst_19 [1, 2, 3] : vector<1x1x16x128xf32> to vector<1xf32>
    %89 = vector.shape_cast %88 : vector<1xf32> to vector<1x1x1x1xf32>
    %90 = vector.extract %89[0, 0, 0, 0] : f32 from vector<1x1x1x1xf32>
    %91 = vector.shape_cast %68 : vector<1x16x128xf32> to vector<1x1x16x128xf32>
    %cst_20 = arith.constant dense<0.000000e+00> : vector<1xf32>
    %92 = vector.multi_reduction <add>, %91, %cst_20 [1, 2, 3] : vector<1x1x16x128xf32> to vector<1xf32>
    %93 = vector.shape_cast %92 : vector<1xf32> to vector<1x1x1x1xf32>
    %94 = vector.extract %93[0, 0, 0, 0] : f32 from vector<1x1x1x1xf32>
    %95 = math.log %0 : vector<1x16x128xf32>
    %cst_21 = arith.constant -1.000000e+02 : f32
    %96 = vector.broadcast %cst_21 : f32 to vector<1x16x128xf32>
    %97 = arith.maximumf %95, %96 : vector<1x16x128xf32>
    %cst_22 = arith.constant 1.000000e+00 : f32
    %98 = vector.broadcast %cst_22 : f32 to vector<1x16x128xf32>
    %99 = arith.subf %98, %0 : vector<1x16x128xf32>
    %100 = math.log %99 : vector<1x16x128xf32>
    %cst_23 = arith.constant -1.000000e+02 : f32
    %101 = vector.broadcast %cst_23 : f32 to vector<1x16x128xf32>
    %102 = arith.maximumf %100, %101 : vector<1x16x128xf32>
    %103 = arith.mulf %1, %97 : vector<1x16x128xf32>
    %cst_24 = arith.constant 1.000000e+00 : f32
    %104 = vector.broadcast %cst_24 : f32 to vector<1x16x128xf32>
    %105 = arith.subf %104, %1 : vector<1x16x128xf32>
    %106 = arith.mulf %105, %102 : vector<1x16x128xf32>
    %107 = arith.addf %103, %106 : vector<1x16x128xf32>
    %108 = vector.shape_cast %107 : vector<1x16x128xf32> to vector<1x1x16x128xf32>
    %cst_25 = arith.constant dense<0.000000e+00> : vector<1xf32>
    %109 = vector.multi_reduction <add>, %108, %cst_25 [1, 2, 3] : vector<1x1x16x128xf32> to vector<1xf32>
    %110 = vector.shape_cast %109 : vector<1xf32> to vector<1x1x1x1xf32>
    %111 = vector.extract %110[0, 0, 0, 0] : f32 from vector<1x1x1x1xf32>
    %cst_26 = arith.constant 0.000000e+00 : f32
    %112 = arith.subf %cst_26, %111 : f32
    %113 = tpu.iota {dimensions = array<i32: 2>} : vector<1x8x128xi32>
    %114 = tpu.iota {dimensions = array<i32: 1>} : vector<1x8x128xi32>
    %c0_i32_27 = arith.constant 0 : i32
    %115 = vector.broadcast %c0_i32_27 : i32 to vector<1x8x128xi32>
    %116 = arith.cmpi eq, %113, %115 : vector<1x8x128xi32>
    %c1_i32_28 = arith.constant 1 : i32
    %117 = vector.broadcast %c1_i32_28 : i32 to vector<1x8x128xi32>
    %118 = arith.cmpi eq, %113, %117 : vector<1x8x128xi32>
    %c2_i32 = arith.constant 2 : i32
    %119 = vector.broadcast %c2_i32 : i32 to vector<1x8x128xi32>
    %120 = arith.cmpi eq, %113, %119 : vector<1x8x128xi32>
    %c3_i32 = arith.constant 3 : i32
    %121 = vector.broadcast %c3_i32 : i32 to vector<1x8x128xi32>
    %122 = arith.cmpi eq, %113, %121 : vector<1x8x128xi32>
    %c4_i32 = arith.constant 4 : i32
    %123 = vector.broadcast %c4_i32 : i32 to vector<1x8x128xi32>
    %124 = arith.cmpi eq, %113, %123 : vector<1x8x128xi32>
    %c5_i32 = arith.constant 5 : i32
    %125 = vector.broadcast %c5_i32 : i32 to vector<1x8x128xi32>
    %126 = arith.cmpi eq, %113, %125 : vector<1x8x128xi32>
    %c6_i32 = arith.constant 6 : i32
    %127 = vector.broadcast %c6_i32 : i32 to vector<1x8x128xi32>
    %128 = arith.cmpi eq, %113, %127 : vector<1x8x128xi32>
    %cst_29 = arith.constant 0.000000e+00 : f32
    %129 = vector.broadcast %112 : f32 to vector<1x8x128xf32>
    %130 = vector.broadcast %cst_29 : f32 to vector<1x8x128xf32>
    %131 = arith.select %128, %129, %130 : vector<1x8x128xi1>, vector<1x8x128xf32>
    %132 = vector.broadcast %94 : f32 to vector<1x8x128xf32>
    %133 = arith.select %126, %132, %131 : vector<1x8x128xi1>, vector<1x8x128xf32>
    %134 = vector.broadcast %90 : f32 to vector<1x8x128xf32>
    %135 = arith.select %124, %134, %133 : vector<1x8x128xi1>, vector<1x8x128xf32>
    %136 = vector.broadcast %86 : f32 to vector<1x8x128xf32>
    %137 = arith.select %122, %136, %135 : vector<1x8x128xi1>, vector<1x8x128xf32>
    %138 = vector.broadcast %81 : f32 to vector<1x8x128xf32>
    %139 = arith.select %120, %138, %137 : vector<1x8x128xi1>, vector<1x8x128xf32>
    %140 = vector.broadcast %77 : f32 to vector<1x8x128xf32>
    %141 = arith.select %118, %140, %139 : vector<1x8x128xi1>, vector<1x8x128xf32>
    %142 = vector.broadcast %73 : f32 to vector<1x8x128xf32>
    %143 = arith.select %116, %142, %141 : vector<1x8x128xi1>, vector<1x8x128xf32>
    %c0_i32_30 = arith.constant 0 : i32
    %144 = vector.broadcast %c0_i32_30 : i32 to vector<1x8x128xi32>
    %145 = arith.cmpi eq, %114, %144 : vector<1x8x128xi32>
    %cst_31 = arith.constant 0.000000e+00 : f32
    %146 = vector.broadcast %cst_31 : f32 to vector<1x8x128xf32>
    %147 = arith.select %145, %143, %146 : vector<1x8x128xi1>, vector<1x8x128xf32>
    %c0_32 = arith.constant 0 : index
    %c0_33 = arith.constant 0 : index
    %c0_34 = arith.constant 0 : index
    %148 = vector.load %arg3[%c0_32, %c0_33, %c0_34] : memref<1x8x128xf32, #tpu.memory_space<vmem>>, vector<1x8x128xf32>
    tpu.vector_store %arg3[%c0_32, %c0_33, %c0_34], %147 {strides = array<i32>} : memref<1x8x128xf32, #tpu.memory_space<vmem>>, vector<1x8x128xf32>,
    return
  }
  func.func @transform_0(%arg0: i32) -> (i32, i32, i32) {
    %c0_i32 = arith.constant 0 : i32
    %c0_i32_0 = arith.constant 0 : i32
    %c0_i32_1 = arith.constant 0 : i32
    return %arg0, %c0_i32, %c0_i32_0 : i32, i32, i32
  }
  func.func @transform_1(%arg0: i32) -> (i32, i32, i32) {
    %c0_i32 = arith.constant 0 : i32
    %c0_i32_0 = arith.constant 0 : i32
    %c0_i32_1 = arith.constant 0 : i32
    return %arg0, %c0_i32, %c0_i32_0 : i32, i32, i32
  }
  func.func @transform_2(%arg0: i32) -> (i32, i32, i32) {
    %c0_i32 = arith.constant 0 : i32
    %c0_i32_0 = arith.constant 0 : i32
    %c0_i32_1 = arith.constant 0 : i32
    return %arg0, %c0_i32, %c0_i32_0 : i32, i32, i32
  }
}

</mosaic_0001>

<llo_original>
// kernel: tpu_custom_call.1
$region0: #{tpu_custom_call.1}
  #allocation0 [shape = 'u32[]', space=smem, size = 0x4, offset = 0x4, fixed_abs, tag = 'smem constant byte address 0x4 - core index']
  #allocation1 [shape = 'u32[72,128]{1,0:T(1,128)}', space=vmem, size = 0x9000, scoped, tag = 'internal scratch']
  %s0 = inlined_call_operand.hbm [shape: f32[1,16,128], index: 0, kind: input, shape index: {}]
  %s1 = inlined_call_operand.hbm [shape: f32[1,16,128], index: 1, kind: input, shape index: {}]
  %s2 = inlined_call_operand.hbm [shape: f32[1,8,128], index: 2, kind: output, shape index: {}]
  %s3 = sld [smem:[#allocation0]]
  $region26: #{tpu_custom_call.1} parent=0
    _
  %s5 = ssub.s32 1, %s3
  %s6 = scalar_select 0, %s5, %s3
  $region1: #{tpu_custom_call.1} parent=0
    #allocation2 [shape = 'u8[8192]{0}', space=vmem, size = 0x2000, scoped, tag = 'input window, operand 0, single buffered']
    #allocation3 [shape = 's32[1]{0}', space=sflag, size = 0x4, scoped, tag = 'scoped memory for tpu_custom_call.1']
    #allocation4 [shape = 's32[1]{0}', space=sflag, size = 0x4, scoped, tag = 'scoped memory for tpu_custom_call.1']
    #allocation5 [shape = 'u8[8192]{0}', space=vmem, size = 0x2000, scoped, tag = 'input window, operand 1, single buffered']
    #allocation6 [shape = 's32[1]{0}', space=sflag, size = 0x4, scoped, tag = 'scoped memory for tpu_custom_call.1']
    #allocation7 [shape = 'u8[4096]{0}', space=vmem, size = 0x1000, scoped, tag = 'output window, operand 0, single buffered']
    %7 = vsyncpa [#allocation3], 0
    %8 = vsyncpa [#allocation6], 0
    %9 = vsyncpa [#allocation4], 0
    // Predicated region
    $region2: #{tpu_custom_call.1} parent=1 // pred_check
      _
    $region3: #{tpu_custom_call.1} parent=1 // pred_check_branch
      %11 = sbr.rel (0) target = $region5
    $region4: #{tpu_custom_call.1} parent=1 // pred_region
      %13 = vsyncadd [#allocation3], 0
      %s14 = sshll.u32 %s0, 4
      %s15 = int_to_ptr.hbm [resolvable:$true] %s14
      %s16 = sshll.u32 [#allocation2], 4
      %s17 = int_to_ptr.vmem [resolvable:$true] %s16
      %22 = dma.hbm_to_vmem [thread:$0]  %s15, 256, %s17, [#allocation3], 128, 128, 8
    $region5: #{tpu_custom_call.1} parent=1 // pred_fallthru
      _
    // Predicated region
    $region6: #{tpu_custom_call.1} parent=1 // pred_check
      _
    $region7: #{tpu_custom_call.1} parent=1 // pred_check_branch
      %24 = sbr.rel (0) target = $region9
    $region8: #{tpu_custom_call.1} parent=1 // pred_region
      %26 = vsyncadd [#allocation6], 0
      %s27 = sshll.u32 %s1, 4
      %s28 = int_to_ptr.hbm [resolvable:$true] %s27
      %s29 = sshll.u32 [#allocation5], 4
      %s30 = int_to_ptr.vmem [resolvable:$true] %s29
      %35 = dma.hbm_to_vmem [thread:$0]  %s28, 256, %s30, [#allocation6], 128, 128, 8
    $region9: #{tpu_custom_call.1} parent=1 // pred_fallthru
      _
    // Predicated region
    $region10: #{tpu_custom_call.1} parent=1 // pred_check
      _
    $region11: #{tpu_custom_call.1} parent=1 // pred_check_branch
      %37 = sbr.rel (0) target = $region13
    $region12: #{tpu_custom_call.1} parent=1 // pred_region
      %39 = dma.done [#allocation3], 256
    $region13: #{tpu_custom_call.1} parent=1 // pred_fallthru
      _
    // Predicated region
    $region14: #{tpu_custom_call.1} parent=1 // pred_check
      _
    $region15: #{tpu_custom_call.1} parent=1 // pred_check_branch
      %41 = sbr.rel (0) target = $region17
    $region16: #{tpu_custom_call.1} parent=1 // pred_region
      %43 = dma.done [#allocation6], 256
    $region17: #{tpu_custom_call.1} parent=1 // pred_fallthru
      _
    %v44 = vld [vmem:[#allocation2] sm:$0xff]
    %v45 = vld [vmem:[#allocation2 + $0x8] sm:$0xff]
    %v46 = vld [vmem:[#allocation5] sm:$0xff]
    %v47 = vld [vmem:[#allocation5 + $0x8] sm:$0xff]
    %v48 = vlaneseq
    %v49 = vand.u32 %v48, 127
    %vm50 = vcmp.lt.s32.totalorder %v49, 0
    %v51 = vsub.s32 0, %v49
    %v52 = vsel %vm50, %v51, %v49
    %v53 = vshrl.u32 %v52, 4
    %v54 = vand.u32 %v52, 15
    %v55 = vsub.s32 0, %v54
    %v56 = vsel %vm50, %v55, %v54
    %vm57 = vcmp.ne.s32.totalorder %v56, 0
    %vm58 = vcmp.lt.s32.totalorder %v56, 0
    %vm59 = vmand %vm58, %vm57
    %v60 = vadd.s32 %v56, 16
    %v61 = vsel %vm59, %v60, %v56
    %vm62 = vcmp.eq.s32.totalorder %v61, 0
    %vm63 = vcmp.eq.s32.totalorder %v61, 15
    %vm66 = vcmask 1040384
    %v67 = vrot.slane %v44, 7
    %v68 = vrot.slane %v45, 7
    %v69 = vsel %vm66, %v67, %v68
    %v72 = vsel %vm66, %v44, %v67
    %vm73 = vcmask 1046528
    %v74 = vrot.slane %v44, 1
    %v75 = vrot.slane %v45, 1
    %v76 = vsel %vm73, %v74, %v75
    %v79 = vsel %vm73, %v75, %v45
    %v80 = vmax.f32 %v72, %v76
    %v81 = vmax.f32 %v69, %v79
    %v82 = vmax.f32 %v44, %v80
    %v83 = vmax.f32 %v45, %v81
    %v84 = vmin.f32 %v72, %v76
    %v85 = vmin.f32 %v69, %v79
    %v86 = vmin.f32 %v44, %v84
    %v87 = vmin.f32 %v45, %v85
    %88 = vrot.lane.b32.xlu0 %v82, 1
    %v89 = vpop.permute.xlu0 %88
    %90 = vrot.lane.b32.xlu0 %v83, 1
    %v91 = vpop.permute.xlu0 %90
    %92 = vrot.lane.b32.xlu0 %v82, 127
    %v93 = vpop.permute.xlu0 %92
    %94 = vrot.lane.b32.xlu0 %v83, 127
    %v95 = vpop.permute.xlu0 %94
    %v96 = vsel %vm62, %v82, %v89
    %v97 = vsel %vm62, %v83, %v91
    %v98 = vsel %vm63, %v82, %v93
    %v99 = vsel %vm63, %v83, %v95
    %v100 = vmax.f32 %v96, %v98
    %v101 = vmax.f32 %v97, %v99
    %v102 = vmax.f32 %v82, %v100
    %v103 = vmax.f32 %v83, %v101
    %104 = vrot.lane.b32.xlu0 %v86, 1
    %v105 = vpop.permute.xlu0 %104
    %106 = vrot.lane.b32.xlu0 %v87, 1
    %v107 = vpop.permute.xlu0 %106
    %108 = vrot.lane.b32.xlu0 %v86, 127
    %v109 = vpop.permute.xlu0 %108
    %110 = vrot.lane.b32.xlu0 %v87, 127
    %v111 = vpop.permute.xlu0 %110
    %v112 = vsel %vm62, %v86, %v105
    %v113 = vsel %vm62, %v87, %v107
    %v114 = vsel %vm63, %v86, %v109
    %v115 = vsel %vm63, %v87, %v111
    %v116 = vmin.f32 %v112, %v114
    %v117 = vmin.f32 %v113, %v115
    %v118 = vmin.f32 %v86, %v116
    %v119 = vmin.f32 %v87, %v117
    %v122 = vrot.slane %v46, 7
    %v123 = vrot.slane %v47, 7
    %v124 = vsel %vm66, %v122, %v123
    %v127 = vsel %vm66, %v46, %v122
    %v128 = vrot.slane %v46, 1
    %v129 = vrot.slane %v47, 1
    %v130 = vsel %vm73, %v128, %v129
    %v133 = vsel %vm73, %v129, %v47
    %v134 = vmax.f32 %v127, %v130
    %v135 = vmax.f32 %v124, %v133
    %v136 = vmax.f32 %v46, %v134
    %v137 = vmax.f32 %v47, %v135
    %v138 = vmin.f32 %v127, %v130
    %v139 = vmin.f32 %v124, %v133
    %v140 = vmin.f32 %v46, %v138
    %v141 = vmin.f32 %v47, %v139
    %142 = vrot.lane.b32.xlu0 %v136, 1
    %v143 = vpop.permute.xlu0 %142
    %144 = vrot.lane.b32.xlu0 %v137, 1
    %v145 = vpop.permute.xlu0 %144
    %146 = vrot.lane.b32.xlu0 %v136, 127
    %v147 = vpop.permute.xlu0 %146
    %148 = vrot.lane.b32.xlu0 %v137, 127
    %v149 = vpop.permute.xlu0 %148
    %v150 = vsel %vm62, %v136, %v143
    %v151 = vsel %vm62, %v137, %v145
    %v152 = vsel %vm63, %v136, %v147
    %v153 = vsel %vm63, %v137, %v149
    %v154 = vmax.f32 %v150, %v152
    %v155 = vmax.f32 %v151, %v153
    %v156 = vmax.f32 %v136, %v154
    %v157 = vmax.f32 %v137, %v155
    %158 = vrot.lane.b32.xlu0 %v140, 1
    %v159 = vpop.permute.xlu0 %158
    %160 = vrot.lane.b32.xlu0 %v141, 1
    %v161 = vpop.permute.xlu0 %160
    %162 = vrot.lane.b32.xlu0 %v140, 127
    %v163 = vpop.permute.xlu0 %162
    %164 = vrot.lane.b32.xlu0 %v141, 127
    %v165 = vpop.permute.xlu0 %164
    %v166 = vsel %vm62, %v140, %v159
    %v167 = vsel %vm62, %v141, %v161
    %v168 = vsel %vm63, %v140, %v163
    %v169 = vsel %vm63, %v141, %v165
    %v170 = vmin.f32 %v166, %v168
    %v171 = vmin.f32 %v167, %v169
    %v172 = vmin.f32 %v140, %v170
    %v173 = vmin.f32 %v141, %v171
    %v174 = vadd.f32 %v102, %v118
    %v175 = vadd.f32 %v103, %v119
    %v176 = vadd.f32 %v156, %v172
    %v177 = vadd.f32 %v157, %v173
    %v178 = vmul.f32 %v44, %v46
    %v179 = vmul.f32 %v45, %v47
    %v180 = vadd.f32 %v178, %v179
    %181 = vadd.xlane.f32.xlu0 %v180
    %v182 = vpop.xlane.xlu0 %181
    %v183 = vrot.slane %v182, 4
    %v184 = vadd.f32 %v182, %v183
    %v185 = vrot.slane %v184, 2
    %v186 = vadd.f32 %v184, %v185
    %v187 = vrot.slane %v186, 1
    %v188 = vadd.f32 %v186, %v187
    %s189 = vtos %v188
    %v190 = vadd.f32 %v44, %v45
    %191 = vadd.xlane.f32.xlu0 %v190
    %v192 = vpop.xlane.xlu0 %191
    %v193 = vrot.slane %v192, 4
    %v194 = vadd.f32 %v192, %v193
    %v195 = vrot.slane %v194, 2
    %v196 = vadd.f32 %v194, %v195
    %v197 = vrot.slane %v196, 1
    %v198 = vadd.f32 %v196, %v197
    %s199 = vtos %v198
    %v200 = vadd.f32 %v46, %v47
    %201 = vadd.xlane.f32.xlu0 %v200
    %v202 = vpop.xlane.xlu0 %201
    %v203 = vrot.slane %v202, 4
    %v204 = vadd.f32 %v202, %v203
    %v205 = vrot.slane %v204, 2
    %v206 = vadd.f32 %v204, %v205
    %v207 = vrot.slane %v206, 1
    %v208 = vadd.f32 %v206, %v207
    %s209 = vtos %v208
    %v210 = vmul.f32 %v174, %v176
    %v211 = vmul.f32 %v175, %v177
    %v212 = vadd.f32 %v210, %v211
    %213 = vadd.xlane.f32.xlu0 %v212
    %v214 = vpop.xlane.xlu0 %213
    %v215 = vrot.slane %v214, 4
    %v216 = vadd.f32 %v214, %v215
    %v217 = vrot.slane %v216, 2
    %v218 = vadd.f32 %v216, %v217
    %v219 = vrot.slane %v218, 1
    %v220 = vadd.f32 %v218, %v219
    %s221 = vtos %v220
    %v222 = vadd.f32 %v174, %v175
    %223 = vadd.xlane.f32.xlu0 %v222
    %v224 = vpop.xlane.xlu0 %223
    %v225 = vrot.slane %v224, 4
    %v226 = vadd.f32 %v224, %v225
    %v227 = vrot.slane %v226, 2
    %v228 = vadd.f32 %v226, %v227
    %v229 = vrot.slane %v228, 1
    %v230 = vadd.f32 %v228, %v229
    %s231 = vtos %v230
    %v232 = vadd.f32 %v176, %v177
    %233 = vadd.xlane.f32.xlu0 %v232
    %v234 = vpop.xlane.xlu0 %233
    %v235 = vrot.slane %v234, 4
    %v236 = vadd.f32 %v234, %v235
    %v237 = vrot.slane %v236, 2
    %v238 = vadd.f32 %v236, %v237
    %v239 = vrot.slane %v238, 1
    %v240 = vadd.f32 %v238, %v239
    %s241 = vtos %v240
    %v242 = vlog2.pop %v44
    %v243 = vmul.f32 %v242, 0.6931472
    %v244 = vlog2.pop %v45
    %v245 = vmul.f32 %v244, 0.6931472
    %v246 = vmax.f32 %v243, -100.0
    %v247 = vmax.f32 %v245, -100.0
    %v248 = vsub.f32 1.0, %v44
    %v249 = vsub.f32 1.0, %v45
    %v250 = vlog2.pop %v248
    %v251 = vmul.f32 %v250, 0.6931472
    %v252 = vlog2.pop %v249
    %v253 = vmul.f32 %v252, 0.6931472
    %v254 = vmax.f32 %v251, -100.0
    %v255 = vmax.f32 %v253, -100.0
    %v256 = vmul.f32 %v46, %v246
    %v257 = vmul.f32 %v47, %v247
    %v258 = vsub.f32 1.0, %v46
    %v259 = vsub.f32 1.0, %v47
    %v260 = vmul.f32 %v258, %v254
    %v261 = vmul.f32 %v259, %v255
    %v262 = vadd.f32 %v256, %v260
    %v263 = vadd.f32 %v257, %v261
    %v264 = vadd.f32 %v262, %v263
    %265 = vadd.xlane.f32.xlu0 %v264
    %v266 = vpop.xlane.xlu0 %265
    %v267 = vrot.slane %v266, 4
    %v268 = vadd.f32 %v266, %v267
    %v269 = vrot.slane %v268, 2
    %v270 = vadd.f32 %v268, %v269
    %v271 = vrot.slane %v270, 1
    %v272 = vadd.f32 %v270, %v271
    %s273 = vtos %v272
    %s274 = ssub.f32 0.0, %s273
    %v275 = vlaneseq
    %v276 = vshrl.u32 %v275, 7
    %vm277 = vcmp.eq.s32.totalorder %v49, 0
    %vm278 = vcmp.eq.s32.totalorder %v49, 1
    %vm279 = vcmp.eq.s32.totalorder %v49, 2
    %vm280 = vcmp.eq.s32.totalorder %v49, 3
    %vm281 = vcmp.eq.s32.totalorder %v49, 4
    %vm282 = vcmp.eq.s32.totalorder %v49, 5
    %vm283 = vcmp.eq.s32.totalorder %v49, 6
    %v284 = vstv %s274
    %v285 = vsel %vm283, %v284, 0.0
    %v286 = vstv %s241
    %v287 = vsel %vm282, %v286, %v285
    %v288 = vstv %s231
    %v289 = vsel %vm281, %v288, %v287
    %v290 = vstv %s221
    %v291 = vsel %vm280, %v290, %v289
    %v292 = vstv %s209
    %v293 = vsel %vm279, %v292, %v291
    %v294 = vstv %s199
    %v295 = vsel %vm278, %v294, %v293
    %v296 = vstv %s189
    %v297 = vsel %vm277, %v296, %v295
    %vm298 = vcmp.eq.s32.totalorder %v276, 0
    %v299 = vsel %vm298, %v297, 0.0
    %300 = vst [vmem:[#allocation7] sm:$0xff] %v299
    // Predicated region
    $region18: #{tpu_custom_call.1} parent=1 // pred_check
      _
    $region19: #{tpu_custom_call.1} parent=1 // pred_check_branch
      %302 = sbr.rel (0) target = $region21
    $region20: #{tpu_custom_call.1} parent=1 // pred_region
      %304 = vsyncadd [#allocation4], 0
      %s306 = sshll.u32 [#allocation7], 4
      %s307 = int_to_ptr.vmem [resolvable:$true] %s306
      %s308 = sshll.u32 %s2, 4
      %s309 = int_to_ptr.hbm [resolvable:$true] %s308
      %311 = dma.vmem_to_hbm [thread:$0]  %s307, 128, %s309, [#allocation4]
    $region21: #{tpu_custom_call.1} parent=1 // pred_fallthru
      _
    // Predicated region
    $region22: #{tpu_custom_call.1} parent=1 // pred_check
      _
    $region23: #{tpu_custom_call.1} parent=1 // pred_check_branch
      %313 = sbr.rel (0) target = $region25
    $region24: #{tpu_custom_call.1} parent=1 // pred_region
      %315 = dma.done [#allocation4], 128
    $region25: #{tpu_custom_call.1} parent=1 // pred_fallthru
      _
    %316 = vsyncpa [#allocation3], 1
    %317 = vsyncpa [#allocation6], 1
    %318 = vsyncpa [#allocation4], 1

</llo_original>
